<compile_context>
chip_gen: v7x
topology: tpu7x:2x2x1
jax: 0.10.0
libtpu: 0.0.40
codegen_flags: <defaults>
</compile_context>

<pallas_src>
import jax
import jax.numpy as jnp
from jax.experimental import pallas as pl
from jax.experimental.pallas import tpu as pltpu

_LANE = 128     # lane width (last-dim tiling unit, f32)
_SUBLANE = 8    # sublane width (second-to-last-dim tiling unit, f32)
# Below this contraction size the first layer runs on the VPU as unrolled
# broadcast FMAs instead of an MXU matmul.
_VPU_FEATURE_THRESHOLD = 8


def _round_up(n, m):
    return ((n + m - 1) // m) * m


def mlp_kernel(x_ref, w1_ref, b1_ref, w2_ref, b2_ref, o_ref):
    x = x_ref[...]                       # (TB, F)   f32
    tb = x.shape[0]
    n_feature = x.shape[1]
    hp = w1_ref.shape[1]                 # padded hidden width (multiple of 128)
    n_out = o_ref.shape[1]               # true (unpadded) output width

    # ---- hidden layer: x @ W1 + b1 ----
    if n_feature <= _VPU_FEATURE_THRESHOLD:
        # K is tiny (e.g. 2): a couple of broadcast multiply-adds per hidden
        # vreg on the VPU beat a systolic pass padded to K=128.
        h = jnp.broadcast_to(b1_ref[...], (tb, hp)).astype(jnp.float32)
        for f in range(n_feature):       # static, fully unrolled
            h = h + x[:, f:f + 1].astype(jnp.float32) * w1_ref[f:f + 1, :]
    else:
        h = jnp.dot(x, w1_ref[...], preferred_element_type=jnp.float32)
        h = h + b1_ref[...]

    # ReLU in the f32 accumulator (cheap VPU max, no dtype churn).
    h = jnp.maximum(h, 0.0)

    # ---- output layer: h @ W2 + b2 ----
    # Contraction dim (HP) is 128-aligned; h stays f32 (no downcast), the MXU
    # accumulates in f32 via preferred_element_type.
    out = jnp.dot(h, w2_ref[...], preferred_element_type=jnp.float32)
    out = out + b2_ref[...]
    # Store only the O real columns: masked store, but 64x fewer HBM bytes
    # than writing the 128-lane-padded slab.
    o_ref[...] = out[:, :n_out].astype(o_ref.dtype)


def net_forward(x, w1, b1, w2, b2, *, block_batch=2048):
    """x: (B, F) f32; w1: (F, H); b1: (H,); w2: (H, O); b2: (O,).

    Weights are stored transposed relative to PyTorch ((in, out)), so the
    kernel computes x @ W + b directly.
    """
    B, F = x.shape
    H = w1.shape[1]
    O = w2.shape[1]
    dtype = x.dtype

    # Lane-pad hidden / output widths of the *weights* to multiples of 128
    # (exact for Linear+ReLU).  The kernel output itself stays O wide.
    HP = _round_up(H, _LANE)
    OP = _round_up(O, _LANE)
    w1p = jnp.zeros((F, HP), dtype).at[:, :H].set(w1)
    b1p = jnp.zeros((1, HP), dtype).at[0, :H].set(b1)
    w2p = jnp.zeros((HP, OP), dtype).at[:H, :O].set(w2)
    b2p = jnp.zeros((1, OP), dtype).at[0, :O].set(b2)

    # Batch tile: multiple of the f32 sublane (8), capped at block_batch.
    # No explicit batch padding: the ragged last block is handled by Pallas'
    # clipped reads / masked writes (rows are independent in this MLP).
    TB = min(_round_up(block_batch, _SUBLANE), _round_up(B, _SUBLANE))
    grid = (pl.cdiv(B, TB),)

    out = pl.pallas_call(
        mlp_kernel,
        out_shape=jax.ShapeDtypeStruct((B, O), dtype),
        grid=grid,
        in_specs=[
            # x: streamed per batch tile (auto double-buffered by Pallas).
            pl.BlockSpec((TB, F), lambda i: (i, 0)),
            # Weights / biases: constant block index -> VMEM-resident across
            # the grid (not re-streamed per step).
            pl.BlockSpec((F, HP), lambda i: (0, 0)),
            pl.BlockSpec((1, HP), lambda i: (0, 0)),
            pl.BlockSpec((HP, OP), lambda i: (0, 0)),
            pl.BlockSpec((1, OP), lambda i: (0, 0)),
        ],
        # Block last dim == full array dim (O) -> legal, and only O columns
        # ever hit HBM (no post-call slice needed).
        out_specs=pl.BlockSpec((TB, O), lambda i: (i, 0)),
        compiler_params=pltpu.CompilerParams(
            # Batch grid steps are independent -> eligible for TC sharding.
            dimension_semantics=("parallel",),
            # Explicit scoped-VMEM budget: ~2-3 MiB needed at TB=2048; 32 MiB
            # is below every generation's physical VMEM (incl. v7x's 64 MiB)
            # and above every generation's scoped default.
            vmem_limit_bytes=32 << 20,
        ),
    )(x, w1p, b1p, w2p, b2p)

    return out


def init_params(key, n_feature, n_hidden, n_output):
    """Deterministic init mimicking torch.nn.Linear default (uniform +/-1/sqrt(fan_in))."""
    k1, k2, k3, k4 = jax.random.split(key, 4)
    bound1 = 1.0 / jnp.sqrt(n_feature)
    bound2 = 1.0 / jnp.sqrt(n_hidden)
    # Stored already transposed relative to PyTorch: (in, out).
    w1 = jax.random.uniform(k1, (n_feature, n_hidden), jnp.float32, -bound1, bound1)
    b1 = jax.random.uniform(k2, (n_hidden,), jnp.float32, -bound1, bound1)
    w2 = jax.random.uniform(k3, (n_hidden, n_output), jnp.float32, -bound2, bound2)
    b2 = jax.random.uniform(k4, (n_output,), jnp.float32, -bound2, bound2)
    return w1, b1, w2, b2


if __name__ == "__main__":
    # Tutorial uses Net(n_feature=2, n_hidden=10, n_output=2) on 200 points.
    batch, n_feature, n_hidden, n_output = 200, 2, 10, 2

    key = jax.random.PRNGKey(0)
    kx, kp = jax.random.split(key)
    x = jax.random.normal(kx, (batch, n_feature), jnp.float32)
    w1, b1, w2, b2 = init_params(kp, n_feature, n_hidden, n_output)

    # Default (large) batch tile: B=200 runs as a single grid step.
    out = net_forward(x, w1, b1, w2, b2)
    jax.block_until_ready(out)

    # Sanity check against a pure-JAX reference of the same forward pass.
    ref = jnp.maximum(x @ w1 + b1, 0.0) @ w2 + b2
    assert out.shape == (batch, n_output)
    assert jnp.allclose(out, ref, atol=1e-5, rtol=1e-5)

    # Correctness check (not a perf config): exercise the multi-step grid and
    # the clipped ragged last block (200 rows, TB=64 -> grid=(4,)).
    out_tiled = net_forward(x, w1, b1, w2, b2, block_batch=64)
    jax.block_until_ready(out_tiled)
    assert jnp.allclose(out_tiled, ref, atol=1e-5, rtol=1e-5)

    print("KERNEL_OK")
</pallas_src>

<mosaic_0001>
module attributes {stable_mosaic.version = 11 : i64} {
  func.func @mlp_kernel(%arg0: i32, %arg1: memref<200x2xf32, #tpu.memory_space<vmem>>, %arg2: memref<2x128xf32, #tpu.memory_space<vmem>>, %arg3: memref<1x128xf32, #tpu.memory_space<vmem>>, %arg4: memref<128x128xf32, #tpu.memory_space<vmem>>, %arg5: memref<1x128xf32, #tpu.memory_space<vmem>>, %arg6: memref<200x2xf32, #tpu.memory_space<vmem>>) attributes {dimension_semantics = [#tpu.dimension_semantics<parallel>], iteration_bounds = array<i64: 1>, scalar_prefetch = 0 : i64, scratch_operands = 0 : i64, tpu.core_type = #tpu.core_type<tc>, window_params = [{transform_indices = @transform_0, window_bounds = array<i64: 200, 2>}, {pipeline_mode = #tpu.pipeline_mode<synchronous>, transform_indices = @transform_1, window_bounds = array<i64: 2, 128>}, {pipeline_mode = #tpu.pipeline_mode<synchronous>, transform_indices = @transform_2, window_bounds = array<i64: 1, 128>}, {pipeline_mode = #tpu.pipeline_mode<synchronous>, transform_indices = @transform_3, window_bounds = array<i64: 128, 128>}, {pipeline_mode = #tpu.pipeline_mode<synchronous>, transform_indices = @transform_4, window_bounds = array<i64: 1, 128>}, {transform_indices = @transform_5, window_bounds = array<i64: 200, 2>}]} {
    %c0 = arith.constant 0 : index
    %c0_0 = arith.constant 0 : index
    %0 = vector.load %arg1[%c0, %c0_0] : memref<200x2xf32, #tpu.memory_space<vmem>>, vector<200x2xf32>
    %c0_1 = arith.constant 0 : index
    %c0_2 = arith.constant 0 : index
    %1 = vector.load %arg3[%c0_1, %c0_2] : memref<1x128xf32, #tpu.memory_space<vmem>>, vector<1x128xf32>
    %2 = vector.shape_cast %1 : vector<1x128xf32> to vector<1x128xf32>
    %3 = vector.broadcast %2 : vector<1x128xf32> to vector<200x128xf32>
    %4 = vector.extract_strided_slice %0 {offsets = [0, 0], sizes = [200, 1], strides = [1, 1]} : vector<200x2xf32> to vector<200x1xf32>
    %c0_3 = arith.constant 0 : index
    %c0_4 = arith.constant 0 : index
    %5 = vector.load %arg2[%c0_3, %c0_4] : memref<2x128xf32, #tpu.memory_space<vmem>>, vector<1x128xf32>
    %6 = vector.broadcast %4 : vector<200x1xf32> to vector<200x128xf32>
    %7 = vector.broadcast %5 : vector<1x128xf32> to vector<200x128xf32>
    %8 = arith.mulf %6, %7 : vector<200x128xf32>
    %9 = arith.addf %3, %8 : vector<200x128xf32>
    %10 = vector.extract_strided_slice %0 {offsets = [0, 1], sizes = [200, 1], strides = [1, 1]} : vector<200x2xf32> to vector<200x1xf32>
    %c1 = arith.constant 1 : index
    %c0_5 = arith.constant 0 : index
    %11 = vector.load %arg2[%c1, %c0_5] : memref<2x128xf32, #tpu.memory_space<vmem>>, vector<1x128xf32>
    %12 = vector.broadcast %10 : vector<200x1xf32> to vector<200x128xf32>
    %13 = vector.broadcast %11 : vector<1x128xf32> to vector<200x128xf32>
    %14 = arith.mulf %12, %13 : vector<200x128xf32>
    %15 = arith.addf %9, %14 : vector<200x128xf32>
    %cst = arith.constant 0.000000e+00 : f32
    %16 = vector.broadcast %cst : f32 to vector<200x128xf32>
    %17 = arith.maximumf %15, %16 : vector<200x128xf32>
    %c0_6 = arith.constant 0 : index
    %c0_7 = arith.constant 0 : index
    %18 = vector.load %arg4[%c0_6, %c0_7] : memref<128x128xf32, #tpu.memory_space<vmem>>, vector<128x128xf32>
    %cst_8 = arith.constant dense<0.000000e+00> : vector<200x128xf32>
    %19 = tpu.matmul %17, %18, %cst_8 {dimension_numbers = #tpu.dot_dimension_numbers<[1], [0], [0], [1], [0, 0, 1, 1], [], []>} : vector<200x128xf32>, vector<128x128xf32>, vector<200x128xf32> -> vector<200x128xf32>
    %c0_9 = arith.constant 0 : index
    %c0_10 = arith.constant 0 : index
    %20 = vector.load %arg5[%c0_9, %c0_10] : memref<1x128xf32, #tpu.memory_space<vmem>>, vector<1x128xf32>
    %21 = vector.broadcast %20 : vector<1x128xf32> to vector<200x128xf32>
    %22 = arith.addf %19, %21 : vector<200x128xf32>
    %23 = vector.extract_strided_slice %22 {offsets = [0, 0], sizes = [200, 2], strides = [1, 1]} : vector<200x128xf32> to vector<200x2xf32>
    %c0_11 = arith.constant 0 : index
    %c0_12 = arith.constant 0 : index
    %24 = vector.load %arg6[%c0_11, %c0_12] : memref<200x2xf32, #tpu.memory_space<vmem>>, vector<200x2xf32>
    tpu.vector_store %arg6[%c0_11, %c0_12], %23 {strides = array<i32>} : memref<200x2xf32, #tpu.memory_space<vmem>>, vector<200x2xf32>,
    return
  }
  func.func @transform_0(%arg0: i32) -> (i32, i32) {
    %c0_i32 = arith.constant 0 : i32
    %c0_i32_0 = arith.constant 0 : i32
    return %arg0, %c0_i32 : i32, i32
  }
  func.func @transform_1(%arg0: i32) -> (i32, i32) {
    %c0_i32 = arith.constant 0 : i32
    %c0_i32_0 = arith.constant 0 : i32
    %c0_i32_1 = arith.constant 0 : i32
    return %c0_i32, %c0_i32_0 : i32, i32
  }
  func.func @transform_2(%arg0: i32) -> (i32, i32) {
    %c0_i32 = arith.constant 0 : i32
    %c0_i32_0 = arith.constant 0 : i32
    %c0_i32_1 = arith.constant 0 : i32
    return %c0_i32, %c0_i32_0 : i32, i32
  }
  func.func @transform_3(%arg0: i32) -> (i32, i32) {
    %c0_i32 = arith.constant 0 : i32
    %c0_i32_0 = arith.constant 0 : i32
    %c0_i32_1 = arith.constant 0 : i32
    return %c0_i32, %c0_i32_0 : i32, i32
  }
  func.func @transform_4(%arg0: i32) -> (i32, i32) {
    %c0_i32 = arith.constant 0 : i32
    %c0_i32_0 = arith.constant 0 : i32
    %c0_i32_1 = arith.constant 0 : i32
    return %c0_i32, %c0_i32_0 : i32, i32
  }
  func.func @transform_5(%arg0: i32) -> (i32, i32) {
    %c0_i32 = arith.constant 0 : i32
    %c0_i32_0 = arith.constant 0 : i32
    return %arg0, %c0_i32 : i32, i32
  }
}

</mosaic_0001>

<llo_original>
// kernel: tpu_custom_call.1
$region0: #{tpu_custom_call.1}
  #allocation0 [shape = 'u32[]', space=smem, size = 0x4, offset = 0x4, fixed_abs, tag = 'smem constant byte address 0x4 - core index']
  #allocation1 [shape = 'u32[144,128]{1,0:T(1,128)}', space=vmem, size = 0x12000, scoped, tag = 'internal scratch']
  %s0 = inlined_call_operand.vmem [shape: f32[200,2], index: 0, kind: input, shape index: {}]
  %s1 = inlined_call_operand.vmem [shape: f32[2,128], index: 1, kind: input, shape index: {}]
  %s2 = inlined_call_operand.vmem [shape: f32[1,128], index: 2, kind: input, shape index: {}]
  %s3 = inlined_call_operand.vmem [shape: f32[128,128], index: 3, kind: input, shape index: {}]
  %s4 = inlined_call_operand.vmem [shape: f32[1,128], index: 4, kind: input, shape index: {}]
  %s5 = inlined_call_operand.vmem [shape: f32[200,2], index: 5, kind: output, shape index: {}]
  %s6 = sld [smem:[#allocation0]]
  $region30: #{tpu_custom_call.1} parent=0
    _
  %s8 = ssub.s32 1, %s6
  %s9 = scalar_select 0, %s8, %s6
  // Predicated region
  $region2: #{tpu_custom_call.1} parent=0 // pred_check
    _
  $region3: #{tpu_custom_call.1} parent=0 // pred_check_branch
    %11 = sbr.rel (0) target = $region5
  $region4: #{tpu_custom_call.1} parent=0 // pred_region
    _
  $region5: #{tpu_custom_call.1} parent=0 // pred_fallthru
    _
  // Predicated region
  $region6: #{tpu_custom_call.1} parent=0 // pred_check
    _
  $region7: #{tpu_custom_call.1} parent=0 // pred_check_branch
    %13 = sbr.rel (0) target = $region9
  $region8: #{tpu_custom_call.1} parent=0 // pred_region
    _
  $region9: #{tpu_custom_call.1} parent=0 // pred_fallthru
    _
  // Predicated region
  $region10: #{tpu_custom_call.1} parent=0 // pred_check
    _
  $region11: #{tpu_custom_call.1} parent=0 // pred_check_branch
    %15 = sbr.rel (0) target = $region13
  $region12: #{tpu_custom_call.1} parent=0 // pred_region
    _
  $region13: #{tpu_custom_call.1} parent=0 // pred_fallthru
    _
  // Predicated region
  $region14: #{tpu_custom_call.1} parent=0 // pred_check
    _
  $region15: #{tpu_custom_call.1} parent=0 // pred_check_branch
    %17 = sbr.rel (0) target = $region17
  $region16: #{tpu_custom_call.1} parent=0 // pred_region
    _
  $region17: #{tpu_custom_call.1} parent=0 // pred_fallthru
    _
  // Predicated region
  $region18: #{tpu_custom_call.1} parent=0 // pred_check
    _
  $region19: #{tpu_custom_call.1} parent=0 // pred_check_branch
    %19 = sbr.rel (0) target = $region21
  $region20: #{tpu_custom_call.1} parent=0 // pred_region
    _
  $region21: #{tpu_custom_call.1} parent=0 // pred_fallthru
    _
  %v20 = vld [vmem:[%s0] sm:$0xff]
  %v21 = vld [vmem:[%s0 + $0x8] sm:$0xff]
  %v22 = vld [vmem:[%s0 + $0x10] sm:$0xff]
  %v23 = vld [vmem:[%s0 + $0x18] sm:$0xff]
  %v24 = vld [vmem:[%s0 + $0x20] sm:$0xff]
  %v25 = vld [vmem:[%s0 + $0x28] sm:$0xff]
  %v26 = vld [vmem:[%s0 + $0x30] sm:$0xff]
  %v27 = vld [vmem:[%s0 + $0x38] sm:$0xff]
  %v28 = vld [vmem:[%s0 + $0x40] sm:$0xff]
  %v29 = vld [vmem:[%s0 + $0x48] sm:$0xff]
  %v30 = vld [vmem:[%s0 + $0x50] sm:$0xff]
  %v31 = vld [vmem:[%s0 + $0x58] sm:$0xff]
  %v32 = vld [vmem:[%s0 + $0x60] sm:$0xff]
  %v33 = vld [vmem:[%s0 + $0x68] sm:$0xff]
  %v34 = vld [vmem:[%s0 + $0x70] sm:$0xff]
  %v35 = vld [vmem:[%s0 + $0x78] sm:$0xff]
  %v36 = vld [vmem:[%s0 + $0x80] sm:$0xff]
  %v37 = vld [vmem:[%s0 + $0x88] sm:$0xff]
  %v38 = vld [vmem:[%s0 + $0x90] sm:$0xff]
  %v39 = vld [vmem:[%s0 + $0x98] sm:$0xff]
  %v40 = vld [vmem:[%s0 + $0xa0] sm:$0xff]
  %v41 = vld [vmem:[%s0 + $0xa8] sm:$0xff]
  %v42 = vld [vmem:[%s0 + $0xb0] sm:$0xff]
  %v43 = vld [vmem:[%s0 + $0xb8] sm:$0xff]
  %v44 = vld [vmem:[%s0 + $0xc0] sm:$0xff]
  %v45 = vld [vmem:[%s2] sm:$0x1]
  %v47 = vlaneseq
  %v48 = vshrl.u32 %v47, 7
  %v49 = vsub.s32 0, %v48
  %v50 = vrot.slane %v45, %v49
  %v52 = vld [vmem:[%s1] sm:$0x1]
  %54 = vset.pattern.permute.xlu0 0
  %55 = vperm.xlu0 %54, %v20
  %v56 = vpop.permute.xlu0 %55
  %59 = vset.pattern.permute.xlu0 0
  %60 = vperm.xlu0 %59, %v21
  %v61 = vpop.permute.xlu0 %60
  %64 = vset.pattern.permute.xlu0 0
  %65 = vperm.xlu0 %64, %v22
  %v66 = vpop.permute.xlu0 %65
  %69 = vset.pattern.permute.xlu0 0
  %70 = vperm.xlu0 %69, %v23
  %v71 = vpop.permute.xlu0 %70
  %74 = vset.pattern.permute.xlu0 0
  %75 = vperm.xlu0 %74, %v24
  %v76 = vpop.permute.xlu0 %75
  %79 = vset.pattern.permute.xlu0 0
  %80 = vperm.xlu0 %79, %v25
  %v81 = vpop.permute.xlu0 %80
  %84 = vset.pattern.permute.xlu0 0
  %85 = vperm.xlu0 %84, %v26
  %v86 = vpop.permute.xlu0 %85
  %89 = vset.pattern.permute.xlu0 0
  %90 = vperm.xlu0 %89, %v27
  %v91 = vpop.permute.xlu0 %90
  %94 = vset.pattern.permute.xlu0 0
  %95 = vperm.xlu0 %94, %v28
  %v96 = vpop.permute.xlu0 %95
  %99 = vset.pattern.permute.xlu0 0
  %100 = vperm.xlu0 %99, %v29
  %v101 = vpop.permute.xlu0 %100
  %104 = vset.pattern.permute.xlu0 0
  %105 = vperm.xlu0 %104, %v30
  %v106 = vpop.permute.xlu0 %105
  %109 = vset.pattern.permute.xlu0 0
  %110 = vperm.xlu0 %109, %v31
  %v111 = vpop.permute.xlu0 %110
  %114 = vset.pattern.permute.xlu0 0
  %115 = vperm.xlu0 %114, %v32
  %v116 = vpop.permute.xlu0 %115
  %119 = vset.pattern.permute.xlu0 0
  %120 = vperm.xlu0 %119, %v33
  %v121 = vpop.permute.xlu0 %120
  %124 = vset.pattern.permute.xlu0 0
  %125 = vperm.xlu0 %124, %v34
  %v126 = vpop.permute.xlu0 %125
  %129 = vset.pattern.permute.xlu0 0
  %130 = vperm.xlu0 %129, %v35
  %v131 = vpop.permute.xlu0 %130
  %134 = vset.pattern.permute.xlu0 0
  %135 = vperm.xlu0 %134, %v36
  %v136 = vpop.permute.xlu0 %135
  %139 = vset.pattern.permute.xlu0 0
  %140 = vperm.xlu0 %139, %v37
  %v141 = vpop.permute.xlu0 %140
  %144 = vset.pattern.permute.xlu0 0
  %145 = vperm.xlu0 %144, %v38
  %v146 = vpop.permute.xlu0 %145
  %149 = vset.pattern.permute.xlu0 0
  %150 = vperm.xlu0 %149, %v39
  %v151 = vpop.permute.xlu0 %150
  %154 = vset.pattern.permute.xlu0 0
  %155 = vperm.xlu0 %154, %v40
  %v156 = vpop.permute.xlu0 %155
  %159 = vset.pattern.permute.xlu0 0
  %160 = vperm.xlu0 %159, %v41
  %v161 = vpop.permute.xlu0 %160
  %164 = vset.pattern.permute.xlu0 0
  %165 = vperm.xlu0 %164, %v42
  %v166 = vpop.permute.xlu0 %165
  %169 = vset.pattern.permute.xlu0 0
  %170 = vperm.xlu0 %169, %v43
  %v171 = vpop.permute.xlu0 %170
  %174 = vset.pattern.permute.xlu0 0
  %175 = vperm.xlu0 %174, %v44
  %v176 = vpop.permute.xlu0 %175
  %v178 = vlaneseq
  %v179 = vshrl.u32 %v178, 7
  %v180 = vsub.s32 0, %v179
  %v181 = vrot.slane %v52, %v180
  %v182 = vmul.f32 %v56, %v181
  %v183 = vmul.f32 %v61, %v181
  %v184 = vmul.f32 %v66, %v181
  %v185 = vmul.f32 %v71, %v181
  %v186 = vmul.f32 %v76, %v181
  %v187 = vmul.f32 %v81, %v181
  %v188 = vmul.f32 %v86, %v181
  %v189 = vmul.f32 %v91, %v181
  %v190 = vmul.f32 %v96, %v181
  %v191 = vmul.f32 %v101, %v181
  %v192 = vmul.f32 %v106, %v181
  %v193 = vmul.f32 %v111, %v181
  %v194 = vmul.f32 %v116, %v181
  %v195 = vmul.f32 %v121, %v181
  %v196 = vmul.f32 %v126, %v181
  %v197 = vmul.f32 %v131, %v181
  %v198 = vmul.f32 %v136, %v181
  %v199 = vmul.f32 %v141, %v181
  %v200 = vmul.f32 %v146, %v181
  %v201 = vmul.f32 %v151, %v181
  %v202 = vmul.f32 %v156, %v181
  %v203 = vmul.f32 %v161, %v181
  %v204 = vmul.f32 %v166, %v181
  %v205 = vmul.f32 %v171, %v181
  %v206 = vmul.f32 %v176, %v181
  %v207 = vadd.f32 %v50, %v182
  %v208 = vadd.f32 %v50, %v183
  %v209 = vadd.f32 %v50, %v184
  %v210 = vadd.f32 %v50, %v185
  %v211 = vadd.f32 %v50, %v186
  %v212 = vadd.f32 %v50, %v187
  %v213 = vadd.f32 %v50, %v188
  %v214 = vadd.f32 %v50, %v189
  %v215 = vadd.f32 %v50, %v190
  %v216 = vadd.f32 %v50, %v191
  %v217 = vadd.f32 %v50, %v192
  %v218 = vadd.f32 %v50, %v193
  %v219 = vadd.f32 %v50, %v194
  %v220 = vadd.f32 %v50, %v195
  %v221 = vadd.f32 %v50, %v196
  %v222 = vadd.f32 %v50, %v197
  %v223 = vadd.f32 %v50, %v198
  %v224 = vadd.f32 %v50, %v199
  %v225 = vadd.f32 %v50, %v200
  %v226 = vadd.f32 %v50, %v201
  %v227 = vadd.f32 %v50, %v202
  %v228 = vadd.f32 %v50, %v203
  %v229 = vadd.f32 %v50, %v204
  %v230 = vadd.f32 %v50, %v205
  %v231 = vadd.f32 %v50, %v206
  %v232 = vld [vmem:[%s1 + $0x1] sm:$0x1]
  %233 = vset.pattern.permute.xlu0 1
  %234 = vperm.xlu0 %233, %v20
  %v235 = vpop.permute.xlu0 %234
  %237 = vset.pattern.permute.xlu0 1
  %238 = vperm.xlu0 %237, %v21
  %v239 = vpop.permute.xlu0 %238
  %241 = vset.pattern.permute.xlu0 1
  %242 = vperm.xlu0 %241, %v22
  %v243 = vpop.permute.xlu0 %242
  %245 = vset.pattern.permute.xlu0 1
  %246 = vperm.xlu0 %245, %v23
  %v247 = vpop.permute.xlu0 %246
  %249 = vset.pattern.permute.xlu0 1
  %250 = vperm.xlu0 %249, %v24
  %v251 = vpop.permute.xlu0 %250
  %253 = vset.pattern.permute.xlu0 1
  %254 = vperm.xlu0 %253, %v25
  %v255 = vpop.permute.xlu0 %254
  %257 = vset.pattern.permute.xlu0 1
  %258 = vperm.xlu0 %257, %v26
  %v259 = vpop.permute.xlu0 %258
  %261 = vset.pattern.permute.xlu0 1
  %262 = vperm.xlu0 %261, %v27
  %v263 = vpop.permute.xlu0 %262
  %265 = vset.pattern.permute.xlu0 1
  %266 = vperm.xlu0 %265, %v28
  %v267 = vpop.permute.xlu0 %266
  %269 = vset.pattern.permute.xlu0 1
  %270 = vperm.xlu0 %269, %v29
  %v271 = vpop.permute.xlu0 %270
  %273 = vset.pattern.permute.xlu0 1
  %274 = vperm.xlu0 %273, %v30
  %v275 = vpop.permute.xlu0 %274
  %277 = vset.pattern.permute.xlu0 1
  %278 = vperm.xlu0 %277, %v31
  %v279 = vpop.permute.xlu0 %278
  %281 = vset.pattern.permute.xlu0 1
  %282 = vperm.xlu0 %281, %v32
  %v283 = vpop.permute.xlu0 %282
  %285 = vset.pattern.permute.xlu0 1
  %286 = vperm.xlu0 %285, %v33
  %v287 = vpop.permute.xlu0 %286
  %289 = vset.pattern.permute.xlu0 1
  %290 = vperm.xlu0 %289, %v34
  %v291 = vpop.permute.xlu0 %290
  %293 = vset.pattern.permute.xlu0 1
  %294 = vperm.xlu0 %293, %v35
  %v295 = vpop.permute.xlu0 %294
  %297 = vset.pattern.permute.xlu0 1
  %298 = vperm.xlu0 %297, %v36
  %v299 = vpop.permute.xlu0 %298
  %301 = vset.pattern.permute.xlu0 1
  %302 = vperm.xlu0 %301, %v37
  %v303 = vpop.permute.xlu0 %302
  %305 = vset.pattern.permute.xlu0 1
  %306 = vperm.xlu0 %305, %v38
  %v307 = vpop.permute.xlu0 %306
  %309 = vset.pattern.permute.xlu0 1
  %310 = vperm.xlu0 %309, %v39
  %v311 = vpop.permute.xlu0 %310
  %313 = vset.pattern.permute.xlu0 1
  %314 = vperm.xlu0 %313, %v40
  %v315 = vpop.permute.xlu0 %314
  %317 = vset.pattern.permute.xlu0 1
  %318 = vperm.xlu0 %317, %v41
  %v319 = vpop.permute.xlu0 %318
  %321 = vset.pattern.permute.xlu0 1
  %322 = vperm.xlu0 %321, %v42
  %v323 = vpop.permute.xlu0 %322
  %325 = vset.pattern.permute.xlu0 1
  %326 = vperm.xlu0 %325, %v43
  %v327 = vpop.permute.xlu0 %326
  %329 = vset.pattern.permute.xlu0 1
  %330 = vperm.xlu0 %329, %v44
  %v331 = vpop.permute.xlu0 %330
  %v333 = vlaneseq
  %v334 = vshrl.u32 %v333, 7
  %v335 = vsub.s32 0, %v334
  %v336 = vrot.slane %v232, %v335
  %v337 = vmul.f32 %v235, %v336
  %v338 = vmul.f32 %v239, %v336
  %v339 = vmul.f32 %v243, %v336
  %v340 = vmul.f32 %v247, %v336
  %v341 = vmul.f32 %v251, %v336
  %v342 = vmul.f32 %v255, %v336
  %v343 = vmul.f32 %v259, %v336
  %v344 = vmul.f32 %v263, %v336
  %v345 = vmul.f32 %v267, %v336
  %v346 = vmul.f32 %v271, %v336
  %v347 = vmul.f32 %v275, %v336
  %v348 = vmul.f32 %v279, %v336
  %v349 = vmul.f32 %v283, %v336
  %v350 = vmul.f32 %v287, %v336
  %v351 = vmul.f32 %v291, %v336
  %v352 = vmul.f32 %v295, %v336
  %v353 = vmul.f32 %v299, %v336
  %v354 = vmul.f32 %v303, %v336
  %v355 = vmul.f32 %v307, %v336
  %v356 = vmul.f32 %v311, %v336
  %v357 = vmul.f32 %v315, %v336
  %v358 = vmul.f32 %v319, %v336
  %v359 = vmul.f32 %v323, %v336
  %v360 = vmul.f32 %v327, %v336
  %v361 = vmul.f32 %v331, %v336
  %v362 = vadd.f32 %v207, %v337
  %v363 = vadd.f32 %v208, %v338
  %v364 = vadd.f32 %v209, %v339
  %v365 = vadd.f32 %v210, %v340
  %v366 = vadd.f32 %v211, %v341
  %v367 = vadd.f32 %v212, %v342
  %v368 = vadd.f32 %v213, %v343
  %v369 = vadd.f32 %v214, %v344
  %v370 = vadd.f32 %v215, %v345
  %v371 = vadd.f32 %v216, %v346
  %v372 = vadd.f32 %v217, %v347
  %v373 = vadd.f32 %v218, %v348
  %v374 = vadd.f32 %v219, %v349
  %v375 = vadd.f32 %v220, %v350
  %v376 = vadd.f32 %v221, %v351
  %v377 = vadd.f32 %v222, %v352
  %v378 = vadd.f32 %v223, %v353
  %v379 = vadd.f32 %v224, %v354
  %v380 = vadd.f32 %v225, %v355
  %v381 = vadd.f32 %v226, %v356
  %v382 = vadd.f32 %v227, %v357
  %v383 = vadd.f32 %v228, %v358
  %v384 = vadd.f32 %v229, %v359
  %v385 = vadd.f32 %v230, %v360
  %v386 = vadd.f32 %v231, %v361
  %v387 = vmax.f32 %v362, 0.0
  %v388 = vmax.f32 %v363, 0.0
  %v389 = vmax.f32 %v364, 0.0
  %v390 = vmax.f32 %v365, 0.0
  %v391 = vmax.f32 %v366, 0.0
  %v392 = vmax.f32 %v367, 0.0
  %v393 = vmax.f32 %v368, 0.0
  %v394 = vmax.f32 %v369, 0.0
  %v395 = vmax.f32 %v370, 0.0
  %v396 = vmax.f32 %v371, 0.0
  %v397 = vmax.f32 %v372, 0.0
  %v398 = vmax.f32 %v373, 0.0
  %v399 = vmax.f32 %v374, 0.0
  %v400 = vmax.f32 %v375, 0.0
  %v401 = vmax.f32 %v376, 0.0
  %v402 = vmax.f32 %v377, 0.0
  %v403 = vmax.f32 %v378, 0.0
  %v404 = vmax.f32 %v379, 0.0
  %v405 = vmax.f32 %v380, 0.0
  %v406 = vmax.f32 %v381, 0.0
  %v407 = vmax.f32 %v382, 0.0
  %v408 = vmax.f32 %v383, 0.0
  %v409 = vmax.f32 %v384, 0.0
  %v410 = vmax.f32 %v385, 0.0
  %v411 = vmax.f32 %v386, 0.0
  %v412 = vld [vmem:[%s3] sm:$0xff]
  %v413 = vld [vmem:[%s3 + $0x8] sm:$0xff]
  %v414 = vld [vmem:[%s3 + $0x10] sm:$0xff]
  %v415 = vld [vmem:[%s3 + $0x18] sm:$0xff]
  %v416 = vld [vmem:[%s3 + $0x20] sm:$0xff]
  %v417 = vld [vmem:[%s3 + $0x28] sm:$0xff]
  %v418 = vld [vmem:[%s3 + $0x30] sm:$0xff]
  %v419 = vld [vmem:[%s3 + $0x38] sm:$0xff]
  %v420 = vld [vmem:[%s3 + $0x40] sm:$0xff]
  %v421 = vld [vmem:[%s3 + $0x48] sm:$0xff]
  %v422 = vld [vmem:[%s3 + $0x50] sm:$0xff]
  %v423 = vld [vmem:[%s3 + $0x58] sm:$0xff]
  %v424 = vld [vmem:[%s3 + $0x60] sm:$0xff]
  %v425 = vld [vmem:[%s3 + $0x68] sm:$0xff]
  %v426 = vld [vmem:[%s3 + $0x70] sm:$0xff]
  %v427 = vld [vmem:[%s3 + $0x78] sm:$0xff]
  %v428 = vld [vmem:[%s4] sm:$0x1]
  %v430 = vlaneseq
  %v431 = vshrl.u32 %v430, 7
  %v432 = vsub.s32 0, %v431
  %v433 = vrot.slane %v428, %v432
  %435 = vmatprep.subr.mxu0 0.0
  %436 = vmatpush1.msra.mxu0 %v412
  %437 = vmatprep.subr.mxu0 0.0
  %438 = vmatpush1.msra.mxu0 %v413
  %439 = vmatprep.subr.mxu0 0.0
  %440 = vmatpush1.msra.mxu0 %v414
  %441 = vmatprep.subr.mxu0 0.0
  %442 = vmatpush1.msra.mxu0 %v415
  %443 = vmatprep.subr.mxu0 0.0
  %444 = vmatpush1.msra.mxu0 %v416
  %445 = vmatprep.subr.mxu0 0.0
  %446 = vmatpush1.msra.mxu0 %v417
  %447 = vmatprep.subr.mxu0 0.0
  %448 = vmatpush1.msra.mxu0 %v418
  %449 = vmatprep.subr.mxu0 0.0
  %450 = vmatpush1.msra.mxu0 %v419
  %451 = vmatprep.subr.mxu0 0.0
  %452 = vmatpush1.msra.mxu0 %v420
  %453 = vmatprep.subr.mxu0 0.0
  %454 = vmatpush1.msra.mxu0 %v421
  %455 = vmatprep.subr.mxu0 0.0
  %456 = vmatpush1.msra.mxu0 %v422
  %457 = vmatprep.subr.mxu0 0.0
  %458 = vmatpush1.msra.mxu0 %v423
  %459 = vmatprep.subr.mxu0 0.0
  %460 = vmatpush1.msra.mxu0 %v424
  %461 = vmatprep.subr.mxu0 0.0
  %462 = vmatpush1.msra.mxu0 %v425
  %463 = vmatprep.subr.mxu0 0.0
  %464 = vmatpush1.msra.mxu0 %v426
  %465 = vmatprep.subr.mxu0 0.0
  %466 = vmatpush1.msra.mxu0 %v427
  %467 = vmatprep.subr.mxu0 0.0
  %468 = vmatpush1.msra.mxu0 0.0
  %469 = vmatprep.subr.mxu0 0.0
  %470 = vmatpush1.msra.mxu0 0.0
  %471 = vmatprep.subr.mxu0 0.0
  %472 = vmatpush1.msra.mxu0 0.0
  %473 = vmatprep.subr.mxu0 0.0
  %474 = vmatpush1.msra.mxu0 0.0
  %475 = vmatprep.subr.mxu0 0.0
  %476 = vmatpush1.msra.mxu0 0.0
  %477 = vmatprep.subr.mxu0 0.0
  %478 = vmatpush1.msra.mxu0 0.0
  %479 = vmatprep.subr.mxu0 0.0
  %480 = vmatpush1.msra.mxu0 0.0
  %481 = vmatprep.subr.mxu0 0.0
  %482 = vmatpush1.msra.mxu0 0.0
  %483 = vmatprep.subr.mxu0 0.0
  %484 = vmatpush1.msra.mxu0 0.0
  %485 = vmatprep.subr.mxu0 0.0
  %486 = vmatpush1.msra.mxu0 0.0
  %487 = vmatprep.subr.mxu0 0.0
  %488 = vmatpush1.msra.mxu0 0.0
  %489 = vmatprep.subr.mxu0 0.0
  %490 = vmatpush1.msra.mxu0 0.0
  %491 = vmatprep.subr.mxu0 0.0
  %492 = vmatpush1.msra.mxu0 0.0
  %493 = vmatprep.subr.mxu0 0.0
  %494 = vmatpush1.msra.mxu0 0.0
  %495 = vmatprep.subr.mxu0 0.0
  %496 = vmatpush1.msra.mxu0 0.0
  %497 = vmatprep.subr.mxu0 0.0
  %498 = vmatpush1.msra.mxu0 0.0
  %499 = vmatprep.mubr.f32.mxu0 0.0
  %500 = vmatmul.mubr.f32.gmra.mrb[0].mxu0 %v387
  %v501 = vpop.f32.mrb[0].mxu0
  %v502 = vadd.f32 %v433, %v501
  %v503 = vpop.f32.mrb[0].mxu0
  %504 = vmatprep.mubr.f32.mxu0 0.0
  %505 = vmatmul.mubr.f32.gmra.mrb[0].mxu0 %v388
  %v506 = vpop.f32.mrb[0].mxu0
  %v507 = vadd.f32 %v433, %v506
  %v508 = vpop.f32.mrb[0].mxu0
  %509 = vmatprep.mubr.f32.mxu0 0.0
  %510 = vmatmul.mubr.f32.gmra.mrb[0].mxu0 %v389
  %v511 = vpop.f32.mrb[0].mxu0
  %v512 = vadd.f32 %v433, %v511
  %v513 = vpop.f32.mrb[0].mxu0
  %514 = vmatprep.mubr.f32.mxu0 0.0
  %515 = vmatmul.mubr.f32.gmra.mrb[0].mxu0 %v390
  %v516 = vpop.f32.mrb[0].mxu0
  %v517 = vadd.f32 %v433, %v516
  %v518 = vpop.f32.mrb[0].mxu0
  %519 = vmatprep.mubr.f32.mxu0 0.0
  %520 = vmatmul.mubr.f32.gmra.mrb[0].mxu0 %v391
  %v521 = vpop.f32.mrb[0].mxu0
  %v522 = vadd.f32 %v433, %v521
  %v523 = vpop.f32.mrb[0].mxu0
  %524 = vmatprep.mubr.f32.mxu0 0.0
  %525 = vmatmul.mubr.f32.gmra.mrb[0].mxu0 %v392
  %v526 = vpop.f32.mrb[0].mxu0
  %v527 = vadd.f32 %v433, %v526
  %v528 = vpop.f32.mrb[0].mxu0
  %529 = vmatprep.mubr.f32.mxu0 0.0
  %530 = vmatmul.mubr.f32.gmra.mrb[0].mxu0 %v393
  %v531 = vpop.f32.mrb[0].mxu0
  %v532 = vadd.f32 %v433, %v531
  %v533 = vpop.f32.mrb[0].mxu0
  %534 = vmatprep.mubr.f32.mxu0 0.0
  %535 = vmatmul.mubr.f32.gmra.mrb[0].mxu0 %v394
  %v536 = vpop.f32.mrb[0].mxu0
  %v537 = vadd.f32 %v433, %v536
  %v538 = vpop.f32.mrb[0].mxu0
  %539 = vmatprep.mubr.f32.mxu0 0.0
  %540 = vmatmul.mubr.f32.gmra.mrb[0].mxu0 %v395
  %v541 = vpop.f32.mrb[0].mxu0
  %v542 = vadd.f32 %v433, %v541
  %v543 = vpop.f32.mrb[0].mxu0
  %544 = vmatprep.mubr.f32.mxu0 0.0
  %545 = vmatmul.mubr.f32.gmra.mrb[0].mxu0 %v396
  %v546 = vpop.f32.mrb[0].mxu0
  %v547 = vadd.f32 %v433, %v546
  %v548 = vpop.f32.mrb[0].mxu0
  %549 = vmatprep.mubr.f32.mxu0 0.0
  %550 = vmatmul.mubr.f32.gmra.mrb[0].mxu0 %v397
  %v551 = vpop.f32.mrb[0].mxu0
  %v552 = vadd.f32 %v433, %v551
  %v553 = vpop.f32.mrb[0].mxu0
  %554 = vmatprep.mubr.f32.mxu0 0.0
  %555 = vmatmul.mubr.f32.gmra.mrb[0].mxu0 %v398
  %v556 = vpop.f32.mrb[0].mxu0
  %v557 = vadd.f32 %v433, %v556
  %v558 = vpop.f32.mrb[0].mxu0
  %559 = vmatprep.mubr.f32.mxu0 0.0
  %560 = vmatmul.mubr.f32.gmra.mrb[0].mxu0 %v399
  %v561 = vpop.f32.mrb[0].mxu0
  %v562 = vadd.f32 %v433, %v561
  %v563 = vpop.f32.mrb[0].mxu0
  %564 = vmatprep.mubr.f32.mxu0 0.0
  %565 = vmatmul.mubr.f32.gmra.mrb[0].mxu0 %v400
  %v566 = vpop.f32.mrb[0].mxu0
  %v567 = vadd.f32 %v433, %v566
  %v568 = vpop.f32.mrb[0].mxu0
  %569 = vmatprep.mubr.f32.mxu0 0.0
  %570 = vmatmul.mubr.f32.gmra.mrb[0].mxu0 %v401
  %v571 = vpop.f32.mrb[0].mxu0
  %v572 = vadd.f32 %v433, %v571
  %v573 = vpop.f32.mrb[0].mxu0
  %574 = vmatprep.mubr.f32.mxu0 0.0
  %575 = vmatmul.mubr.f32.gmra.mrb[0].mxu0 %v402
  %v576 = vpop.f32.mrb[0].mxu0
  %v577 = vadd.f32 %v433, %v576
  %v578 = vpop.f32.mrb[0].mxu0
  %579 = vmatprep.mubr.f32.mxu0 0.0
  %580 = vmatmul.mubr.f32.gmra.mrb[0].mxu0 %v403
  %v581 = vpop.f32.mrb[0].mxu0
  %v582 = vadd.f32 %v433, %v581
  %v583 = vpop.f32.mrb[0].mxu0
  %584 = vmatprep.mubr.f32.mxu0 0.0
  %585 = vmatmul.mubr.f32.gmra.mrb[0].mxu0 %v404
  %v586 = vpop.f32.mrb[0].mxu0
  %v587 = vadd.f32 %v433, %v586
  %v588 = vpop.f32.mrb[0].mxu0
  %589 = vmatprep.mubr.f32.mxu0 0.0
  %590 = vmatmul.mubr.f32.gmra.mrb[0].mxu0 %v405
  %v591 = vpop.f32.mrb[0].mxu0
  %v592 = vadd.f32 %v433, %v591
  %v593 = vpop.f32.mrb[0].mxu0
  %594 = vmatprep.mubr.f32.mxu0 0.0
  %595 = vmatmul.mubr.f32.gmra.mrb[0].mxu0 %v406
  %v596 = vpop.f32.mrb[0].mxu0
  %v597 = vadd.f32 %v433, %v596
  %v598 = vpop.f32.mrb[0].mxu0
  %599 = vmatprep.mubr.f32.mxu0 0.0
  %600 = vmatmul.mubr.f32.gmra.mrb[0].mxu0 %v407
  %v601 = vpop.f32.mrb[0].mxu0
  %v602 = vadd.f32 %v433, %v601
  %v603 = vpop.f32.mrb[0].mxu0
  %604 = vmatprep.mubr.f32.mxu0 0.0
  %605 = vmatmul.mubr.f32.gmra.mrb[0].mxu0 %v408
  %v606 = vpop.f32.mrb[0].mxu0
  %v607 = vadd.f32 %v433, %v606
  %v608 = vpop.f32.mrb[0].mxu0
  %609 = vmatprep.mubr.f32.mxu0 0.0
  %610 = vmatmul.mubr.f32.gmra.mrb[0].mxu0 %v409
  %v611 = vpop.f32.mrb[0].mxu0
  %v612 = vadd.f32 %v433, %v611
  %v613 = vpop.f32.mrb[0].mxu0
  %614 = vmatprep.mubr.f32.mxu0 0.0
  %615 = vmatmul.mubr.f32.gmra.mrb[0].mxu0 %v410
  %v616 = vpop.f32.mrb[0].mxu0
  %v617 = vadd.f32 %v433, %v616
  %v618 = vpop.f32.mrb[0].mxu0
  %619 = vmatprep.mubr.f32.mxu0 0.0
  %620 = vmatmul.mubr.f32.gmra.mrb[0].mxu0 %v411
  %v621 = vpop.f32.mrb[0].mxu0
  %v622 = vadd.f32 %v433, %v621
  %v623 = vpop.f32.mrb[0].mxu0
  %624 = vdwg.mxu0
  %vm625 = vcmask 15360
  %626 = vst.msk [vmem:[%s5] sm:$0xff] %vm625, %v502
  %627 = vst.msk [vmem:[%s5 + $0x8] sm:$0xff] %vm625, %v507
  %628 = vst.msk [vmem:[%s5 + $0x10] sm:$0xff] %vm625, %v512
  %629 = vst.msk [vmem:[%s5 + $0x18] sm:$0xff] %vm625, %v517
  %630 = vst.msk [vmem:[%s5 + $0x20] sm:$0xff] %vm625, %v522
  %631 = vst.msk [vmem:[%s5 + $0x28] sm:$0xff] %vm625, %v527
  %632 = vst.msk [vmem:[%s5 + $0x30] sm:$0xff] %vm625, %v532
  %633 = vst.msk [vmem:[%s5 + $0x38] sm:$0xff] %vm625, %v537
  %634 = vst.msk [vmem:[%s5 + $0x40] sm:$0xff] %vm625, %v542
  %635 = vst.msk [vmem:[%s5 + $0x48] sm:$0xff] %vm625, %v547
  %636 = vst.msk [vmem:[%s5 + $0x50] sm:$0xff] %vm625, %v552
  %637 = vst.msk [vmem:[%s5 + $0x58] sm:$0xff] %vm625, %v557
  %638 = vst.msk [vmem:[%s5 + $0x60] sm:$0xff] %vm625, %v562
  %639 = vst.msk [vmem:[%s5 + $0x68] sm:$0xff] %vm625, %v567
  %640 = vst.msk [vmem:[%s5 + $0x70] sm:$0xff] %vm625, %v572
  %641 = vst.msk [vmem:[%s5 + $0x78] sm:$0xff] %vm625, %v577
  %642 = vst.msk [vmem:[%s5 + $0x80] sm:$0xff] %vm625, %v582
  %643 = vst.msk [vmem:[%s5 + $0x88] sm:$0xff] %vm625, %v587
  %644 = vst.msk [vmem:[%s5 + $0x90] sm:$0xff] %vm625, %v592
  %645 = vst.msk [vmem:[%s5 + $0x98] sm:$0xff] %vm625, %v597
  %646 = vst.msk [vmem:[%s5 + $0xa0] sm:$0xff] %vm625, %v602
  %647 = vst.msk [vmem:[%s5 + $0xa8] sm:$0xff] %vm625, %v607
  %648 = vst.msk [vmem:[%s5 + $0xb0] sm:$0xff] %vm625, %v612
  %649 = vst.msk [vmem:[%s5 + $0xb8] sm:$0xff] %vm625, %v617
  %650 = vst.msk [vmem:[%s5 + $0xc0] sm:$0xff] %vm625, %v622
  // Predicated region
  $region22: #{tpu_custom_call.1} parent=0 // pred_check
    _
  $region23: #{tpu_custom_call.1} parent=0 // pred_check_branch
    %652 = sbr.rel (0) target = $region25
  $region24: #{tpu_custom_call.1} parent=0 // pred_region
    _
  $region25: #{tpu_custom_call.1} parent=0 // pred_fallthru
    _
  // Predicated region
  $region26: #{tpu_custom_call.1} parent=0 // pred_check
    _
  $region27: #{tpu_custom_call.1} parent=0 // pred_check_branch
    %654 = sbr.rel (0) target = $region29
  $region28: #{tpu_custom_call.1} parent=0 // pred_region
    _
  $region29: #{tpu_custom_call.1} parent=0 // pred_fallthru
    _

</llo_original>
